<compile_context>
chip_gen: v6e
topology: v6e:2x2x1
jax: 0.10.0
libtpu: 0.0.40
codegen_flags: <defaults>
</compile_context>

<pallas_src>
import jax
import jax.numpy as jnp
import numpy as np
from jax.experimental import pallas as pl
from jax.experimental.pallas import tpu as pltpu


def _adaptive_norm_kernel(x_ref, wp_ref, sp_ref, o_ref):
    # x_ref:  (TB, L) f32, streamed HBM->VMEM by BlockSpec.
    # wp_ref: (8, 8) f32 VMEM.  Rows: 0..3 = W1[in, :], 4 = b1,
    #         5 = W2[:, 0], 6 = W2[:, 1], 7 = zero padding.
    # sp_ref: (4,) f32 SMEM: [b2[0], b2[1], scale, shift].
    x = x_ref[...]                                    # (TB, L)
    L = x.shape[1]
    inv_l = 1.0 / L

    # Per-row stats: one lane reduce each (sum / max / min), all on the
    # VMEM-resident block.
    mean = jnp.sum(x, axis=1, keepdims=True) * inv_l  # (TB, 1)
    mx = jnp.max(x, axis=1, keepdims=True)            # (TB, 1)
    mn = jnp.min(x, axis=1, keepdims=True)            # (TB, 1)

    # Two-pass Bessel-corrected variance (matches torch.std, avoids the
    # sumsq - L*mean^2 cancellation).  d is one block-sized VMEM temporary;
    # no extra HBM traffic.
    d = x - mean
    var = jnp.sum(d * d, axis=1, keepdims=True) / (L - 1)
    std = jnp.sqrt(var)                               # (TB, 1)

    # Lane-packed adaptation_net: Linear(4,8) -> ReLU -> Linear(8,2).
    # Layer 1: four (TB,1)x(1,8) broadcast mul-adds + bias + ReLU on (TB,8).
    h = (wp_ref[4:5, :]
         + mean * wp_ref[0:1, :]
         + std * wp_ref[1:2, :]
         + mx * wp_ref[2:3, :]
         + mn * wp_ref[3:4, :])                       # (TB, 8)
    h = jnp.maximum(h, 0.0)

    # Layer 2: one broadcast mul + one 8-lane reduce per output.
    a_scale = jnp.sum(h * wp_ref[5:6, :], axis=1, keepdims=True) + sp_ref[0]
    a_shift = jnp.sum(h * wp_ref[6:7, :], axis=1, keepdims=True) + sp_ref[1]

    scale = sp_ref[2]
    shift = sp_ref[3]
    # Lane-dense, full-L unmasked store.
    o_ref[...] = x * (scale + a_scale) + (shift + a_shift)


def _round_up(n, m):
    return ((n + m - 1) // m) * m


def _choose_block_b(B, L):
    # ~2 MiB of x per block -> in+out double-buffering ~8 MiB plus one
    # block-sized temporary: fits v5e's 16 MiB scoped-VMEM default and is
    # comfortable under the explicit 32 MiB limit set below (v6e/v7x).
    target_bytes = 2 << 20
    tb = max(8, (target_bytes // max(L * 4, 4)) // 8 * 8)
    if B > 8:
        # Guarantee >= 2 grid steps (megacore sharding on v7x and
        # DMA/compute overlap); prefer >= 4 steps for large batches.
        nsteps = 4 if B >= 1024 else 2
        tb = min(tb, max(8, _round_up(pl.cdiv(B, nsteps), 8)))
    return max(8, min(tb, _round_up(B, 8)))


def simple_adaptive_norm(x, w1, b1, w2, b2, scale, shift, *, block_b=None):
    """x: (B, 1, L) float32. w1: (4, 8) (in, out), b1: (8,), w2: (8, 2) (in, out),
    b2: (2,), scale/shift: (1,).  Returns (B, 1, L) float32."""
    B, C, L = x.shape
    assert C == 1, "SimpleAdaptiveNorm forward requires channel dim == 1"
    x2d = x.reshape(B, L)

    if block_b is None:
        block_b = _choose_block_b(B, L)
    block_b = max(8, (block_b // 8) * 8)
    nb = pl.cdiv(B, block_b)

    # Pack all MLP weights into one tiny VMEM slab (rows lane-aligned to 8).
    wp = jnp.zeros((8, 8), jnp.float32)
    wp = wp.at[0:4, :].set(w1.astype(jnp.float32))         # W1 (in, out)
    wp = wp.at[4, :].set(b1.astype(jnp.float32))           # b1
    wp = wp.at[5, :].set(w2[:, 0].astype(jnp.float32))     # W2[:, 0]
    wp = wp.at[6, :].set(w2[:, 1].astype(jnp.float32))     # W2[:, 1]
    # Remaining scalars in one flat SMEM array.
    sp = jnp.concatenate([
        b2.reshape(-1), scale.reshape(-1), shift.reshape(-1)
    ]).astype(jnp.float32)                                  # (4,)

    out2d = pl.pallas_call(
        _adaptive_norm_kernel,
        out_shape=jax.ShapeDtypeStruct((B, L), jnp.float32),
        grid=(nb,),
        in_specs=[
            pl.BlockSpec((block_b, L), lambda i: (i, 0)),   # x: streamed
            pl.BlockSpec((8, 8), lambda i: (0, 0)),         # packed weights (VMEM resident)
            pl.BlockSpec(memory_space=pltpu.MemorySpace.SMEM),  # packed scalars
        ],
        out_specs=pl.BlockSpec((block_b, L), lambda i: (i, 0)),
        compiler_params=pltpu.CompilerParams(
            dimension_semantics=("parallel",),
            vmem_limit_bytes=32 * 1024 * 1024),
    )(x2d, wp, sp)
    return out2d.reshape(B, 1, L)


def _reference(x, w1, b1, w2, b2, scale, shift):
    B, C, L = x.shape
    x2d = x.reshape(B, L)
    mean = jnp.mean(x2d, axis=1)
    std = jnp.std(x2d, axis=1, ddof=1)
    mx = jnp.max(x2d, axis=1)
    mn = jnp.min(x2d, axis=1)
    stats = jnp.stack([mean, std, mx, mn], axis=1)          # (B, 4)
    h = jnp.maximum(stats @ w1 + b1, 0.0)
    adj = h @ w2 + b2
    a_scale = adj[:, 0].reshape(-1, 1, 1)
    a_shift = adj[:, 1].reshape(-1, 1, 1)
    return x * (scale[0] + a_scale) + (shift[0] + a_shift)


if __name__ == "__main__":
    key = jax.random.PRNGKey(0)
    k_x1, k_x2, k_x3, k_w1, k_b1, k_w2, k_b2 = jax.random.split(key, 7)

    # PyTorch Linear default init: U(-1/sqrt(fan_in), +1/sqrt(fan_in)).
    bound1 = 1.0 / np.sqrt(4.0)
    bound2 = 1.0 / np.sqrt(8.0)
    w1 = jax.random.uniform(k_w1, (4, 8), jnp.float32, -bound1, bound1)   # (in, out)
    b1 = jax.random.uniform(k_b1, (8,), jnp.float32, -bound1, bound1)
    w2 = jax.random.uniform(k_w2, (8, 2), jnp.float32, -bound2, bound2)   # (in, out)
    b2 = jax.random.uniform(k_b2, (2,), jnp.float32, -bound2, bound2)
    scale = jnp.ones((1,), jnp.float32)    # nn.Parameter(torch.ones(1))
    shift = jnp.zeros((1,), jnp.float32)   # nn.Parameter(torch.zeros(1))

    cases = [
        (k_x1, 16, 256),   # base case: 2 grid steps
        (k_x2, 13, 384),   # B not a multiple of the block -> padded last block
        (k_x3, 8, 1024),   # longer L, single-block path, nonzero mean offset
    ]
    for k, B, L in cases:
        # Offset + scale so |mean| >> 0 (exercises centered-variance precision).
        x = jax.random.normal(k, (B, 1, L), dtype=jnp.float32) * 2.0 + 3.0
        out = simple_adaptive_norm(x, w1, b1, w2, b2, scale, shift)
        out = jax.block_until_ready(out)
        ref = _reference(x, w1, b1, w2, b2, scale, shift)
        np.testing.assert_allclose(np.asarray(out), np.asarray(ref),
                                   rtol=1e-5, atol=1e-5)

    print("KERNEL_OK")
</pallas_src>

<mosaic_0001>
module attributes {stable_mosaic.version = 11 : i64} {
  func.func @_adaptive_norm_kernel(%arg0: i32, %arg1: memref<8x256xf32, #tpu.memory_space<vmem>>, %arg2: memref<8x8xf32, #tpu.memory_space<vmem>>, %arg3: memref<4xf32, #tpu.memory_space<smem>>, %arg4: memref<8x256xf32, #tpu.memory_space<vmem>>) attributes {dimension_semantics = [#tpu.dimension_semantics<parallel>], iteration_bounds = array<i64: 2>, scalar_prefetch = 0 : i64, scratch_operands = 0 : i64, tpu.core_type = #tpu.core_type<tc>, window_params = [{transform_indices = @transform_0, window_bounds = array<i64: 8, 256>}, {pipeline_mode = #tpu.pipeline_mode<synchronous>, transform_indices = @transform_1, window_bounds = array<i64: 8, 8>}, {transform_indices = @transform_2, window_bounds = array<i64: 4>}, {transform_indices = @transform_3, window_bounds = array<i64: 8, 256>}]} {
    %c0 = arith.constant 0 : index
    %c0_0 = arith.constant 0 : index
    %0 = vector.load %arg1[%c0, %c0_0] : memref<8x256xf32, #tpu.memory_space<vmem>>, vector<8x256xf32>
    %cst = arith.constant dense<0.000000e+00> : vector<8xf32>
    %1 = vector.multi_reduction <add>, %0, %cst [1] : vector<8x256xf32> to vector<8xf32>
    %2 = vector.shape_cast %1 : vector<8xf32> to vector<8x1xf32>
    %cst_1 = arith.constant 3.906250e-03 : f32
    %3 = vector.broadcast %cst_1 : f32 to vector<8x1xf32>
    %4 = arith.mulf %2, %3 : vector<8x1xf32>
    %cst_2 = arith.constant dense<0xFF800000> : vector<8xf32>
    %5 = vector.multi_reduction <maximumf>, %0, %cst_2 [1] : vector<8x256xf32> to vector<8xf32>
    %6 = vector.shape_cast %5 : vector<8xf32> to vector<8x1xf32>
    %cst_3 = arith.constant dense<0x7F800000> : vector<8xf32>
    %7 = vector.multi_reduction <minimumf>, %0, %cst_3 [1] : vector<8x256xf32> to vector<8xf32>
    %8 = vector.shape_cast %7 : vector<8xf32> to vector<8x1xf32>
    %9 = vector.broadcast %4 : vector<8x1xf32> to vector<8x256xf32>
    %10 = arith.subf %0, %9 : vector<8x256xf32>
    %11 = arith.mulf %10, %10 : vector<8x256xf32>
    %cst_4 = arith.constant dense<0.000000e+00> : vector<8xf32>
    %12 = vector.multi_reduction <add>, %11, %cst_4 [1] : vector<8x256xf32> to vector<8xf32>
    %13 = vector.shape_cast %12 : vector<8xf32> to vector<8x1xf32>
    %cst_5 = arith.constant 2.550000e+02 : f32
    %14 = vector.broadcast %cst_5 : f32 to vector<8x1xf32>
    %15 = arith.divf %13, %14 : vector<8x1xf32>
    %16 = math.sqrt %15 : vector<8x1xf32>
    %c4 = arith.constant 4 : index
    %c0_6 = arith.constant 0 : index
    %17 = vector.load %arg2[%c4, %c0_6] : memref<8x8xf32, #tpu.memory_space<vmem>>, vector<1x8xf32>
    %c0_7 = arith.constant 0 : index
    %c0_8 = arith.constant 0 : index
    %18 = vector.load %arg2[%c0_7, %c0_8] : memref<8x8xf32, #tpu.memory_space<vmem>>, vector<1x8xf32>
    %19 = vector.broadcast %4 : vector<8x1xf32> to vector<8x8xf32>
    %20 = vector.broadcast %18 : vector<1x8xf32> to vector<8x8xf32>
    %21 = arith.mulf %19, %20 : vector<8x8xf32>
    %22 = vector.broadcast %17 : vector<1x8xf32> to vector<8x8xf32>
    %23 = arith.addf %22, %21 : vector<8x8xf32>
    %c1 = arith.constant 1 : index
    %c0_9 = arith.constant 0 : index
    %24 = vector.load %arg2[%c1, %c0_9] : memref<8x8xf32, #tpu.memory_space<vmem>>, vector<1x8xf32>
    %25 = vector.broadcast %16 : vector<8x1xf32> to vector<8x8xf32>
    %26 = vector.broadcast %24 : vector<1x8xf32> to vector<8x8xf32>
    %27 = arith.mulf %25, %26 : vector<8x8xf32>
    %28 = arith.addf %23, %27 : vector<8x8xf32>
    %c2 = arith.constant 2 : index
    %c0_10 = arith.constant 0 : index
    %29 = vector.load %arg2[%c2, %c0_10] : memref<8x8xf32, #tpu.memory_space<vmem>>, vector<1x8xf32>
    %30 = vector.broadcast %6 : vector<8x1xf32> to vector<8x8xf32>
    %31 = vector.broadcast %29 : vector<1x8xf32> to vector<8x8xf32>
    %32 = arith.mulf %30, %31 : vector<8x8xf32>
    %33 = arith.addf %28, %32 : vector<8x8xf32>
    %c3 = arith.constant 3 : index
    %c0_11 = arith.constant 0 : index
    %34 = vector.load %arg2[%c3, %c0_11] : memref<8x8xf32, #tpu.memory_space<vmem>>, vector<1x8xf32>
    %35 = vector.broadcast %8 : vector<8x1xf32> to vector<8x8xf32>
    %36 = vector.broadcast %34 : vector<1x8xf32> to vector<8x8xf32>
    %37 = arith.mulf %35, %36 : vector<8x8xf32>
    %38 = arith.addf %33, %37 : vector<8x8xf32>
    %cst_12 = arith.constant 0.000000e+00 : f32
    %39 = vector.broadcast %cst_12 : f32 to vector<8x8xf32>
    %40 = arith.maximumf %38, %39 : vector<8x8xf32>
    %c5 = arith.constant 5 : index
    %c0_13 = arith.constant 0 : index
    %41 = vector.load %arg2[%c5, %c0_13] : memref<8x8xf32, #tpu.memory_space<vmem>>, vector<1x8xf32>
    %42 = vector.broadcast %41 : vector<1x8xf32> to vector<8x8xf32>
    %43 = arith.mulf %40, %42 : vector<8x8xf32>
    %cst_14 = arith.constant dense<0.000000e+00> : vector<8xf32>
    %44 = vector.multi_reduction <add>, %43, %cst_14 [1] : vector<8x8xf32> to vector<8xf32>
    %45 = vector.shape_cast %44 : vector<8xf32> to vector<8x1xf32>
    %c0_15 = arith.constant 0 : index
    %46 = memref.load %arg3[%c0_15] : memref<4xf32, #tpu.memory_space<smem>>
    %47 = vector.broadcast %46 : f32 to vector<8x1xf32>
    %48 = arith.addf %45, %47 : vector<8x1xf32>
    %c6 = arith.constant 6 : index
    %c0_16 = arith.constant 0 : index
    %49 = vector.load %arg2[%c6, %c0_16] : memref<8x8xf32, #tpu.memory_space<vmem>>, vector<1x8xf32>
    %50 = vector.broadcast %49 : vector<1x8xf32> to vector<8x8xf32>
    %51 = arith.mulf %40, %50 : vector<8x8xf32>
    %cst_17 = arith.constant dense<0.000000e+00> : vector<8xf32>
    %52 = vector.multi_reduction <add>, %51, %cst_17 [1] : vector<8x8xf32> to vector<8xf32>
    %53 = vector.shape_cast %52 : vector<8xf32> to vector<8x1xf32>
    %c1_18 = arith.constant 1 : index
    %54 = memref.load %arg3[%c1_18] : memref<4xf32, #tpu.memory_space<smem>>
    %55 = vector.broadcast %54 : f32 to vector<8x1xf32>
    %56 = arith.addf %53, %55 : vector<8x1xf32>
    %c2_19 = arith.constant 2 : index
    %57 = memref.load %arg3[%c2_19] : memref<4xf32, #tpu.memory_space<smem>>
    %c3_20 = arith.constant 3 : index
    %58 = memref.load %arg3[%c3_20] : memref<4xf32, #tpu.memory_space<smem>>
    %59 = vector.broadcast %57 : f32 to vector<8x1xf32>
    %60 = arith.addf %59, %48 : vector<8x1xf32>
    %61 = vector.broadcast %60 : vector<8x1xf32> to vector<8x256xf32>
    %62 = arith.mulf %0, %61 : vector<8x256xf32>
    %63 = vector.broadcast %58 : f32 to vector<8x1xf32>
    %64 = arith.addf %63, %56 : vector<8x1xf32>
    %65 = vector.broadcast %64 : vector<8x1xf32> to vector<8x256xf32>
    %66 = arith.addf %62, %65 : vector<8x256xf32>
    %c0_21 = arith.constant 0 : index
    %c0_22 = arith.constant 0 : index
    %67 = vector.load %arg4[%c0_21, %c0_22] : memref<8x256xf32, #tpu.memory_space<vmem>>, vector<8x256xf32>
    tpu.vector_store %arg4[%c0_21, %c0_22], %66 {strides = array<i32>} : memref<8x256xf32, #tpu.memory_space<vmem>>, vector<8x256xf32>,
    return
  }
  func.func @transform_0(%arg0: i32) -> (i32, i32) {
    %c0_i32 = arith.constant 0 : i32
    %c0_i32_0 = arith.constant 0 : i32
    return %arg0, %c0_i32 : i32, i32
  }
  func.func @transform_1(%arg0: i32) -> (i32, i32) {
    %c0_i32 = arith.constant 0 : i32
    %c0_i32_0 = arith.constant 0 : i32
    %c0_i32_1 = arith.constant 0 : i32
    return %c0_i32, %c0_i32_0 : i32, i32
  }
  func.func @transform_2(%arg0: i32) -> i32 {
    %c0_i32 = arith.constant 0 : i32
    %c0_i32_0 = arith.constant 0 : i32
    return %c0_i32 : i32
  }
  func.func @transform_3(%arg0: i32) -> (i32, i32) {
    %c0_i32 = arith.constant 0 : i32
    %c0_i32_0 = arith.constant 0 : i32
    return %arg0, %c0_i32 : i32, i32
  }
}

</mosaic_0001>

<llo_original>
// kernel: tpu_custom_call.1
$region0: #{tpu_custom_call.1}
  #allocation0 [shape = 'u32[]', space=smem, size = 0x4, offset = 0x4, fixed_abs, tag = 'smem constant byte address 0x4 - core index']
  #allocation1 [shape = 'u32[144,128]{1,0:T(1,128)}', space=vmem, size = 0x12000, scoped, tag = 'internal scratch']
  %s0 = inlined_call_operand.hbm [shape: f32[16,256], index: 0, kind: input, shape index: {}]
  %s1 = inlined_call_operand.hbm [shape: f32[8,8], index: 1, kind: input, shape index: {}]
  %s2 = inlined_call_operand.vmem [shape: f32[4], index: 2, kind: input, shape index: {}]
  %s3 = inlined_call_operand.hbm [shape: f32[16,256], index: 3, kind: output, shape index: {}]
  %s4 = sld [smem:[#allocation0]]
  $region57: #{tpu_custom_call.1} parent=0
    _
  %s6 = ssub.s32 1, %s4
  %s7 = scalar_select 0, %s6, %s4
  $region1: #{tpu_custom_call.1} parent=0
    #allocation2 [shape = 'u8[16384]{0}', space=vmem, size = 0x4000, scoped, tag = 'input window, operand 0']
    #allocation3 [shape = 's32[2]{0}', space=sflag, size = 0x8, scoped, tag = 'scoped memory for tpu_custom_call.1']
    #allocation4 [shape = 's32[2]{0}', space=sflag, size = 0x8, scoped, tag = 'scoped memory for tpu_custom_call.1']
    #allocation5 [shape = 's32[2]{0}', space=sflag, size = 0x8, scoped, tag = 'scoped memory for tpu_custom_call.1']
    #allocation6 [shape = 'u8[4096]{0}', space=vmem, size = 0x1000, scoped, tag = 'input window, operand 1, single buffered']
    #allocation7 [shape = 's32[1]{0}', space=sflag, size = 0x4, scoped, tag = 'scoped memory for tpu_custom_call.1']
    #allocation8 [shape = 'u8[512]{0}', space=smem, size = 0x200, scoped, tag = 'input window, operand 2, single buffered']
    #allocation9 [shape = 'u8[16384]{0}', space=vmem, size = 0x4000, scoped, tag = 'output window, operand 0']
    %8 = vsyncpa [#allocation3], 0
    %s9 = scalar_lea.sflag [#allocation3], 1
    %10 = vsyncpa %s9, 0
    %11 = vsyncpa [#allocation7], 0
    %12 = vsyncpa [#allocation5], 0
    %13 = vsyncpa [#allocation4], 0
    %s14 = scalar_lea.sflag [#allocation4], 1
    %15 = vsyncpa %s14, 0
    loop: start=0, step=1, limit=4
    $region2: #{tpu_custom_call.1} parent=1 // loop_pre_header
      _
    $region3: #{tpu_custom_call.1} parent=1 // loop_header
      %s17 = sphi 0, %s21
      %p18 = scmp.ge.s32.totalorder %s17, 4
      %s27 = sphi 0, %s29
      %s30 = sphi 0, %s27
      %s31 = sphi 0, %s30
      %s47 = sphi 0, %s31
      %s51 = sphi 0, %s51
      %s53 = sphi 0, %s51
      %s54 = sphi 0, %s53
      %s68 = sphi 0, %s54
      %s72 = sphi 0, %s72
      %s74 = sphi 0, %s72
      %s75 = sphi 0, %s74
      %s89 = sphi 0, %s75
      %s95 = sphi 0, %s97
      %s98 = sphi 0, %s95
      %s99 = sphi 0, %s98
      %s115 = sphi 0, %s99
    $region4: #{tpu_custom_call.1} parent=1 // loop_header_branch
      %20 = sbr.rel (%p18) target = $region8
    $region5: #{tpu_custom_call.1} parent=1 // loop_body
      %s22 = ssub.s32 %s17, 1
      %s23 = ssub.s32 %s17, 2
      %s24 = sadd.s32 %s17, 1
      %s25 = ssub.s32 %s17, %s24
      %p26 = scmp.eq.s32.totalorder %s25, 0
      %s28 = sadd.s32 %s27, 1
      %s29 = scalar_select %p26, %s27, %s28
      %p32 = pneg %p26
      %p33 = scmp.eq.s32.totalorder %s17, 1
      %p34 = por %p32, %p33
      %p35 = scmp.ne.s32.totalorder %s27, %s30
      %p36 = scmp.eq.s32.totalorder %s17, 0
      %p37 = por %p35, %p36
      %p38 = scmp.ne.s32.totalorder %s27, %s30
      %p39 = scmp.eq.s32.totalorder %s22, 1
      %p40 = por %p38, %p39
      %p41 = scmp.ne.s32.totalorder %s30, %s31
      %p42 = scmp.eq.s32.totalorder %s22, 0
      %p43 = por %p41, %p42
      %p44 = scmp.ne.s32.totalorder %s30, %s31
      %p45 = scmp.eq.s32.totalorder %s23, 1
      %p46 = por %p44, %p45
      %p48 = scmp.ne.s32.totalorder %s31, %s47
      %p49 = scmp.eq.s32.totalorder %s23, 0
      %p50 = por %p48, %p49
      %s52 = sadd.s32 %s51, 1
      %p55 = scmp.eq.s32.totalorder %s17, 1
      %p56 = scmp.ne.s32.totalorder %s51, %s53
      %p57 = scmp.eq.s32.totalorder %s17, 0
      %p58 = por %p56, %p57
      %p59 = scmp.ne.s32.totalorder %s51, %s53
      %p60 = scmp.eq.s32.totalorder %s22, 1
      %p61 = por %p59, %p60
      %p62 = scmp.ne.s32.totalorder %s53, %s54
      %p63 = scmp.eq.s32.totalorder %s22, 0
      %p64 = por %p62, %p63
      %p65 = scmp.ne.s32.totalorder %s53, %s54
      %p66 = scmp.eq.s32.totalorder %s23, 1
      %p67 = por %p65, %p66
      %p69 = scmp.ne.s32.totalorder %s54, %s68
      %p70 = scmp.eq.s32.totalorder %s23, 0
      %p71 = por %p69, %p70
      %s73 = sadd.s32 %s72, 1
      %p76 = scmp.eq.s32.totalorder %s17, 1
      %p77 = scmp.ne.s32.totalorder %s72, %s74
      %p78 = scmp.eq.s32.totalorder %s17, 0
      %p79 = por %p77, %p78
      %p80 = scmp.ne.s32.totalorder %s72, %s74
      %p81 = scmp.eq.s32.totalorder %s22, 1
      %p82 = por %p80, %p81
      %p83 = scmp.ne.s32.totalorder %s74, %s75
      %p84 = scmp.eq.s32.totalorder %s22, 0
      %p85 = por %p83, %p84
      %p86 = scmp.ne.s32.totalorder %s74, %s75
      %p87 = scmp.eq.s32.totalorder %s23, 1
      %p88 = por %p86, %p87
      %p90 = scmp.ne.s32.totalorder %s75, %s89
      %p91 = scmp.eq.s32.totalorder %s23, 0
      %p92 = por %p90, %p91
      %s93 = ssub.s32 %s17, %s24
      %p94 = scmp.eq.s32.totalorder %s93, 0
      %s96 = sadd.s32 %s95, 1
      %s97 = scalar_select %p94, %s95, %s96
      %p100 = pneg %p94
      %p101 = scmp.eq.s32.totalorder %s17, 1
      %p102 = por %p100, %p101
      %p103 = scmp.ne.s32.totalorder %s95, %s98
      %p104 = scmp.eq.s32.totalorder %s17, 0
      %p105 = por %p103, %p104
      %p106 = scmp.ne.s32.totalorder %s95, %s98
      %p107 = scmp.eq.s32.totalorder %s22, 1
      %p108 = por %p106, %p107
      %p109 = scmp.ne.s32.totalorder %s98, %s99
      %p110 = scmp.eq.s32.totalorder %s22, 0
      %p111 = por %p109, %p110
      %p112 = scmp.ne.s32.totalorder %s98, %s99
      %p113 = scmp.eq.s32.totalorder %s23, 1
      %p114 = por %p112, %p113
      %p116 = scmp.ne.s32.totalorder %s99, %s115
      %p117 = scmp.eq.s32.totalorder %s23, 0
      %p118 = por %p116, %p117
      %p119 = scmp.le.s32.totalorder 1, %s17
      %p120 = scmp.lt.s32.totalorder %s17, 3
      %p121 = pnand %p119, %p120
      %p122 = pneg %p121
      // Predicated region
      $region9: #{tpu_custom_call.1} parent=5 // pred_check
        _
      $region10: #{tpu_custom_call.1} parent=5 // pred_check_branch
        %124 = sbr.rel (%p121) target = $region12
      $region11: #{tpu_custom_call.1} parent=5 // pred_region
        %s125 = ssub.s32 %s17, 1
        // Predicated region
        $region13: #{tpu_custom_call.1} parent=11 // pred_check
          %p126 = pneg %p64
        $region14: #{tpu_custom_call.1} parent=11 // pred_check_branch
          %128 = sbr.rel (%p126) target = $region16
        $region15: #{tpu_custom_call.1} parent=11 // pred_region
          %s130 = ssub.s32 128, 128
          %131 = vsyncadd [#allocation7], %s130
          %s133 = sshll.u32 [#allocation6], 4
          %s134 = int_to_ptr.vmem [resolvable:$true] %s133
          %136 = dma.hbm_to_vmem [thread:$0]  %s1, 128, %s134, [#allocation7]
        $region16: #{tpu_custom_call.1} parent=11 // pred_fallthru
          _
        // Predicated region
        $region17: #{tpu_custom_call.1} parent=11 // pred_check
          %p137 = pneg %p85
        $region18: #{tpu_custom_call.1} parent=11 // pred_check_branch
          %139 = sbr.rel (%p137) target = $region20
        $region19: #{tpu_custom_call.1} parent=11 // pred_region
          %s141 = ssub.s32 16, 16
          %142 = vsyncadd [#allocation5], %s141
          %s144 = sshll.u32 %s2, 4
          %s145 = int_to_ptr.vmem [resolvable:$true] %s144
          %147 = dma.vmem_to_smem %s145, 16, [#allocation8], [#allocation5]
        $region20: #{tpu_custom_call.1} parent=11 // pred_fallthru
          _
      $region12: #{tpu_custom_call.1} parent=5 // pred_fallthru
        _
      %p148 = scmp.lt.s32.totalorder %s17, 2
      // Predicated region
      $region21: #{tpu_custom_call.1} parent=5 // pred_check
        %p149 = pneg %p148
      $region22: #{tpu_custom_call.1} parent=5 // pred_check_branch
        %151 = sbr.rel (%p149) target = $region24
      $region23: #{tpu_custom_call.1} parent=5 // pred_region
        // Predicated region
        $region25: #{tpu_custom_call.1} parent=23 // pred_check
          %p152 = pneg %p37
        $region26: #{tpu_custom_call.1} parent=23 // pred_check_branch
          %154 = sbr.rel (%p152) target = $region28
        $region27: #{tpu_custom_call.1} parent=23 // pred_region
          %s155 = sand.u32 %s27, 1
          %s156 = scalar_lea.sflag [#allocation3], %s155
          %s157 = sand.u32 %s27, 1
          %s158 = smul.addr %s157, 16
          %s159 = scalar_lea.vmem [#allocation2], %s158
          %s161 = ssub.s32 256, 256
          %162 = vsyncadd %s156, %s161
          %s163 = smul.addr %s17, 2
          %s164 = smul.addr %s163, 128
          %s165 = scalar_lea.hbm %s0, %s164
          %s167 = sshll.u32 %s159, 4
          %s168 = int_to_ptr.vmem [resolvable:$true] %s167
          %170 = dma.hbm_to_vmem [thread:$0]  %s165, 256, %s168, %s156
        $region28: #{tpu_custom_call.1} parent=23 // pred_fallthru
          _
      $region24: #{tpu_custom_call.1} parent=5 // pred_fallthru
        _
      %p171 = scmp.le.s32.totalorder 1, %s17
      %p172 = scmp.lt.s32.totalorder %s17, 3
      %p173 = pnand %p171, %p172
      %p174 = pneg %p173
      // Predicated region
      $region29: #{tpu_custom_call.1} parent=5 // pred_check
        _
      $region30: #{tpu_custom_call.1} parent=5 // pred_check_branch
        %176 = sbr.rel (%p173) target = $region32
      $region31: #{tpu_custom_call.1} parent=5 // pred_region
        %s177 = ssub.s32 %s17, 1
        %s178 = sand.u32 %s30, 1
        %s179 = scalar_lea.sflag [#allocation3], %s178
        %s180 = sand.u32 %s30, 1
        %s181 = smul.addr %s180, 16
        %s182 = scalar_lea.vmem [#allocation2], %s181
        // Predicated region
        $region33: #{tpu_custom_call.1} parent=31 // pred_check
          %p183 = pneg %p43
        $region34: #{tpu_custom_call.1} parent=31 // pred_check_branch
          %185 = sbr.rel (%p183) target = $region36
        $region35: #{tpu_custom_call.1} parent=31 // pred_region
          %186 = dma.done %s179, 256
        $region36: #{tpu_custom_call.1} parent=31 // pred_fallthru
          _
        // Predicated region
        $region37: #{tpu_custom_call.1} parent=31 // pred_check
          %p187 = pneg %p64
        $region38: #{tpu_custom_call.1} parent=31 // pred_check_branch
          %189 = sbr.rel (%p187) target = $region40
        $region39: #{tpu_custom_call.1} parent=31 // pred_region
          %190 = dma.done [#allocation7], 128
        $region40: #{tpu_custom_call.1} parent=31 // pred_fallthru
          _
        // Predicated region
        $region41: #{tpu_custom_call.1} parent=31 // pred_check
          %p191 = pneg %p85
        $region42: #{tpu_custom_call.1} parent=31 // pred_check_branch
          %193 = sbr.rel (%p191) target = $region44
        $region43: #{tpu_custom_call.1} parent=31 // pred_region
          %194 = dma.done [#allocation5], 16
        $region44: #{tpu_custom_call.1} parent=31 // pred_fallthru
          _
        %195 = sfence
        %s196 = sand.u32 %s30, 1
        %s197 = scalar_lea.sflag [#allocation3], %s196
        %s198 = sand.u32 %s30, 1
        %s199 = smul.addr %s198, 16
        %s200 = scalar_lea.vmem [#allocation2], %s199
        %p201 = pneg %p43
        %p202 = pneg %p40
        %p203 = pneg %p64
        %p204 = pneg %p61
        %p205 = pneg %p85
        %p206 = pneg %p82
        %p207 = pneg %p111
        %p208 = pneg %p108
        %s209 = sand.u32 %s98, 1
        %s210 = scalar_lea.sflag [#allocation4], %s209
        %s211 = sand.u32 %s98, 1
        %s212 = smul.addr %s211, 16
        %s213 = scalar_lea.vmem [#allocation9], %s212
        %v214 = vld [vmem:[%s182] sm:$0xff]
        %v215 = vld [vmem:[%s182 + $0x8] sm:$0xff]
        %v216 = vadd.f32 %v214, %v215
        %217 = vadd.xlane.f32.xlu0 %v216
        %v218 = vpop.xlane.xlu0 %217
        %v219 = vmul.f32 %v218, 0.00390625
        %v220 = vmax.f32 %v214, %v215
        %221 = vmax.xlane.f32.xlu0 %v220
        %v222 = vpop.xlane.xlu0 %221
        %v223 = vmin.f32 %v214, %v215
        %224 = vmin.xlane.f32.xlu0 %v223
        %v225 = vpop.xlane.xlu0 %224
        %v226 = vsub.f32 %v214, %v219
        %v227 = vsub.f32 %v215, %v219
        %v228 = vmul.f32 %v226, %v226
        %v229 = vmul.f32 %v227, %v227
        %v230 = vadd.f32 %v228, %v229
        %231 = vadd.xlane.f32.xlu0 %v230
        %v232 = vpop.xlane.xlu0 %231
        %v233 = vrcp.pop 255.0
        %v234 = vmul.f32 %v232, %v233
        %v235 = vrsqrt.pop %v234
        %v236 = vmul.f32 %v234, %v235
        %vm237 = vcmp.eq.f32.partialorder %v234, inf
        %v238 = vsel %vm237, %v234, %v236
        %vm239 = vcmp.eq.f32.partialorder %v234, 0.0
        %v240 = vand.u32 %v234, 2147483648
        %v241 = vsel %vm239, %v240, %v238
        %v242 = vld [vmem:[#allocation6 + $0x4] sm:$0x1]
        %v243 = vld [vmem:[#allocation6] sm:$0x1]
        %v244 = vlaneseq
        %v245 = vshrl.u32 %v244, 7
        %v246 = vsub.s32 0, %v245
        %v247 = vrot.slane %v243, %v246
        %v248 = vmul.f32 %v219, %v247
        %v249 = vlaneseq
        %v250 = vshrl.u32 %v249, 7
        %v251 = vsub.s32 0, %v250
        %v252 = vrot.slane %v242, %v251
        %v253 = vadd.f32 %v252, %v248
        %v254 = vld [vmem:[#allocation6 + $0x1] sm:$0x1]
        %v255 = vlaneseq
        %v256 = vshrl.u32 %v255, 7
        %v257 = vsub.s32 0, %v256
        %v258 = vrot.slane %v254, %v257
        %v259 = vmul.f32 %v241, %v258
        %v260 = vadd.f32 %v253, %v259
        %v261 = vld [vmem:[#allocation6 + $0x2] sm:$0x1]
        %v262 = vlaneseq
        %v263 = vshrl.u32 %v262, 7
        %v264 = vsub.s32 0, %v263
        %v265 = vrot.slane %v261, %v264
        %v266 = vmul.f32 %v222, %v265
        %v267 = vadd.f32 %v260, %v266
        %v268 = vld [vmem:[#allocation6 + $0x3] sm:$0x1]
        %v269 = vlaneseq
        %v270 = vshrl.u32 %v269, 7
        %v271 = vsub.s32 0, %v270
        %v272 = vrot.slane %v268, %v271
        %v273 = vmul.f32 %v225, %v272
        %v274 = vadd.f32 %v267, %v273
        %v275 = vmax.f32 %v274, 0.0
        %v276 = vld [vmem:[#allocation6 + $0x5] sm:$0x1]
        %v277 = vlaneseq
        %v278 = vshrl.u32 %v277, 7
        %v279 = vsub.s32 0, %v278
        %v280 = vrot.slane %v276, %v279
        %v281 = vmul.f32 %v275, %v280
        %vm282 = vcmask 64512
        %v283 = vsel %vm282, %v281, 0.0
        %284 = vadd.xlane.f32.xlu0 %v283
        %v285 = vpop.xlane.xlu0 %284
        %s286 = sld [smem:[#allocation8]]
        %v287 = vstv %s286
        %v288 = vadd.f32 %v285, %v287
        %v289 = vld [vmem:[#allocation6 + $0x6] sm:$0x1]
        %v290 = vlaneseq
        %v291 = vshrl.u32 %v290, 7
        %v292 = vsub.s32 0, %v291
        %v293 = vrot.slane %v289, %v292
        %v294 = vmul.f32 %v275, %v293
        %v295 = vsel %vm282, %v294, 0.0
        %296 = vadd.xlane.f32.xlu0 %v295
        %v297 = vpop.xlane.xlu0 %296
        %s298 = sld [smem:[#allocation8 + $0x1]]
        %v299 = vstv %s298
        %v300 = vadd.f32 %v297, %v299
        %s301 = sld [smem:[#allocation8 + $0x2]]
        %s302 = sld [smem:[#allocation8 + $0x3]]
        %v303 = vstv %s301
        %v304 = vadd.f32 %v303, %v288
        %v305 = vmul.f32 %v214, %v304
        %v306 = vmul.f32 %v215, %v304
        %v307 = vstv %s302
        %v308 = vadd.f32 %v307, %v300
        %v309 = vadd.f32 %v305, %v308
        %v310 = vadd.f32 %v306, %v308
        %311 = vst [vmem:[%s213] sm:$0xff] %v309
        %312 = vst [vmem:[%s213 + $0x8] sm:$0xff] %v310
        %s313 = sand.u32 %s98, 1
        %s314 = scalar_lea.sflag [#allocation4], %s313
        %s315 = sand.u32 %s98, 1
        %s316 = smul.addr %s315, 16
        %s317 = scalar_lea.vmem [#allocation9], %s316
        // Predicated region
        $region45: #{tpu_custom_call.1} parent=31 // pred_check
          %p318 = pneg %p108
        $region46: #{tpu_custom_call.1} parent=31 // pred_check_branch
          %320 = sbr.rel (%p318) target = $region48
        $region47: #{tpu_custom_call.1} parent=31 // pred_region
          %s322 = ssub.s32 256, 256
          %323 = vsyncadd %s314, %s322
          %s324 = smul.addr %s22, 2
          %s325 = smul.addr %s324, 128
          %s326 = scalar_lea.hbm %s3, %s325
          %s328 = sshll.u32 %s317, 4
          %s329 = int_to_ptr.vmem [resolvable:$true] %s328
          %331 = dma.vmem_to_hbm [thread:$0]  %s329, 256, %s326, %s314
        $region48: #{tpu_custom_call.1} parent=31 // pred_fallthru
          _
      $region32: #{tpu_custom_call.1} parent=5 // pred_fallthru
        _
      %p332 = scmp.le.s32.totalorder 2, %s17
      // Predicated region
      $region49: #{tpu_custom_call.1} parent=5 // pred_check
        %p333 = pneg %p332
      $region50: #{tpu_custom_call.1} parent=5 // pred_check_branch
        %335 = sbr.rel (%p333) target = $region52
      $region51: #{tpu_custom_call.1} parent=5 // pred_region
        %s336 = ssub.s32 %s17, 2
        // Predicated region
        $region53: #{tpu_custom_call.1} parent=51 // pred_check
          %p337 = pneg %p114
        $region54: #{tpu_custom_call.1} parent=51 // pred_check_branch
          %339 = sbr.rel (%p337) target = $region56
        $region55: #{tpu_custom_call.1} parent=51 // pred_region
          %s340 = sand.u32 %s99, 1
          %s341 = scalar_lea.sflag [#allocation4], %s340
          %s342 = sand.u32 %s99, 1
          %s343 = smul.addr %s342, 16
          %s344 = scalar_lea.vmem [#allocation9], %s343
          %345 = dma.done %s341, 256
        $region56: #{tpu_custom_call.1} parent=51 // pred_fallthru
          _
      $region52: #{tpu_custom_call.1} parent=5 // pred_fallthru
        _
    $region6: #{tpu_custom_call.1} parent=1 // loop_footer
      %s21 = sadd.s32 1, %s17
    $region7: #{tpu_custom_call.1} parent=1 // loop_footer_branch
      %16 = sbr.rel target = $region3
    $region8: #{tpu_custom_call.1} parent=1 // loop_exit
      _
    %346 = vsyncpa [#allocation3], 1
    %s347 = scalar_lea.sflag [#allocation3], 1
    %348 = vsyncpa %s347, 1
    %349 = vsyncpa [#allocation7], 1
    %350 = vsyncpa [#allocation4], 1
    %s351 = scalar_lea.sflag [#allocation4], 1
    %352 = vsyncpa %s351, 1
    %353 = vsyncpa [#allocation5], 1
    %s354 = scalar_lea.sflag [#allocation5], 1
    %355 = vsyncpa %s354, 1

</llo_original>
